<compile_context>
chip_gen: v5e
topology: v5e:2x2
jax: 0.10.0
libtpu: 0.0.40
codegen_flags: <defaults>
</compile_context>

<pallas_src>
import functools

import jax
import jax.numpy as jnp
from jax.experimental import pallas as pl
from jax.experimental.pallas import tpu as pltpu


def _memnet_fused_kernel(*refs, has_mask):
    """All hops of UserMemory.forward for the whole batch in one invocation.

    refs (has_mask=False): u0_ref (B,P,M), c_ref (B,L,M), w_ref (H,M,M), o_ref (B,P,M)
    refs (has_mask=True):  u0_ref, c_ref, w_ref, mask_ref (B,L) int32, o_ref
    """
    if has_mask:
        u0_ref, c_ref, w_ref, mask_ref, o_ref = refs
    else:
        u0_ref, c_ref, w_ref, o_ref = refs
        mask_ref = None

    c = c_ref[...].astype(jnp.float32)        # (B, L, M) — loaded once, reused every hop
    mem = u0_ref[...].astype(jnp.float32)     # (B, P, M) — evolving memory, stays on-chip
    max_hop = w_ref.shape[0]

    if mask_ref is not None:
        keep = mask_ref[...] != 0             # (B, L)
        keep = keep[:, None, :]               # (B, 1, L) broadcasts over P

    # max_hop is tiny and compile-time static -> unroll.
    for hop in range(max_hop):
        w = w_ref[hop]                        # (M, M), PyTorch (out_features, in_features)

        # key = mem @ W.T  (contract mem dim 2 with W dim 1; no transpose materialized)
        key = jax.lax.dot_general(
            mem, w,
            dimension_numbers=(((2,), (1,)), ((), ())),
            preferred_element_type=jnp.float32)              # (B, P, M)

        # attn logits = key @ context^T, batched over B
        attn = jax.lax.dot_general(
            key, c,
            dimension_numbers=(((2,), (2,)), ((0,), (0,))),
            preferred_element_type=jnp.float32)              # (B, P, L)

        if mask_ref is not None:
            attn = jnp.where(keep, attn, -jnp.inf)

        # softmax over the context axis
        m = jnp.max(attn, axis=-1, keepdims=True)
        e = jnp.exp(attn - m)
        denom = jnp.sum(e, axis=-1, keepdims=True)
        weights = e * pl.reciprocal(denom, approx=False)     # (B, P, L)

        # o_k = weights @ context, batched over B
        o_k = jax.lax.dot_general(
            weights, c,
            dimension_numbers=(((2,), (1,)), ((0,), (0,))),
            preferred_element_type=jnp.float32)              # (B, P, M)

        mem = mem + o_k

    o_ref[...] = mem.astype(o_ref.dtype)


def user_memory_forward(context, user_memory_list, linear_query_weights, mask=None):
    """Pallas implementation of UserMemory.forward (mode='general').

    Args:
        context: (B, L, H) array.
        user_memory_list: list of (B, P, M) arrays; only element 0 is read
            (matching the PyTorch module, which overwrites the rest).
        linear_query_weights: list of max_hop (M, M) weights in PyTorch layout.
        mask: optional (B, L) array; positions equal to 0 are masked out.
    Returns:
        final_memory: (B, P, M)
    """
    u0 = user_memory_list[0]
    B, P, M = u0.shape
    Bc, L, H = context.shape
    assert B == Bc and H == M, "general attention mode requires hidden_size == memory_size"

    w_stacked = jnp.stack(linear_query_weights, axis=0)      # (max_hop, M, M)

    inputs = [u0, context, w_stacked]
    if mask is not None:
        inputs.append(mask.astype(jnp.int32))

    # Whole operands resident in VMEM, single invocation (no grid): everything
    # here is a few KiB, so launch/DMA overhead — not compute — dominates, and
    # fusing all hops + the batch into one call is the main win.
    vmem_specs = [pl.BlockSpec(memory_space=pltpu.MemorySpace.VMEM) for _ in inputs]
    out_spec = pl.BlockSpec(memory_space=pltpu.MemorySpace.VMEM)

    kernel = functools.partial(_memnet_fused_kernel, has_mask=mask is not None)
    return pl.pallas_call(
        kernel,
        out_shape=jax.ShapeDtypeStruct((B, P, M), u0.dtype),
        in_specs=vmem_specs,
        out_specs=out_spec,
    )(*inputs)


def user_memory_forward_ref(context, user_memory_list, linear_query_weights, mask=None):
    """Pure-JAX reference matching the PyTorch forward (loop over the list, as written)."""
    max_hop = len(linear_query_weights)
    mem = list(user_memory_list)
    final_memory = None
    for hop in range(max_hop):
        u_k = mem[hop]
        key = jnp.einsum("bpm,nm->bpn", u_k, linear_query_weights[hop])
        attn = jnp.einsum("bpm,blm->bpl", key, context)
        if mask is not None:
            attn = jnp.where(mask[:, None, :] == 0, -jnp.inf, attn)
        weights = jax.nn.softmax(attn, axis=-1)
        o_k = jnp.einsum("bpl,blm->bpm", weights, context)
        updated = u_k + o_k
        if hop + 1 == max_hop:
            final_memory = updated
        else:
            mem[hop + 1] = updated
    assert final_memory is not None
    return final_memory


if __name__ == "__main__":
    # Module hyper-params (synthetic, deterministic):
    #   query_size == memory_size == hidden_size = 32, max_hop = 2 (exercise fusion)
    B, P, L, M = 2, 8, 8, 32          # batch, profile_len, context_len, memory_size
    max_hop = 2

    key = jax.random.PRNGKey(0)
    k_ctx, k_mem, k_w, k_mask = jax.random.split(key, 4)

    # context: (B, L, H)
    context = jax.random.normal(k_ctx, (B, L, M), dtype=jnp.float32)
    # user_memory_list[0]: (B, P, M) — analogous to Embedding init N(0, 0.1)
    u0 = 0.1 * jax.random.normal(k_mem, (B, P, M), dtype=jnp.float32)
    user_memory_list = [u0] + [jnp.zeros((B, P, M), jnp.float32) for _ in range(max_hop)]

    # linear_query[hop].weight: (memory_size, query_size), init N(0, init_std=0.02)
    w_keys = jax.random.split(k_w, max_hop)
    linear_query_weights = [
        0.02 * jax.random.normal(w_keys[h], (M, M), dtype=jnp.float32)
        for h in range(max_hop)
    ]

    # --- mask=None path (primary) ---
    out = user_memory_forward(context, list(user_memory_list), linear_query_weights)
    out = jax.block_until_ready(out)
    ref = user_memory_forward_ref(context, list(user_memory_list), linear_query_weights)
    assert out.shape == (B, P, M)
    assert jnp.allclose(out, ref, atol=1e-5, rtol=1e-5), "Pallas output mismatch (mask=None)"

    # --- masked path (every row keeps at least one valid context position) ---
    mask = (jax.random.uniform(k_mask, (B, L)) > 0.3).astype(jnp.int32)
    mask = mask.at[:, 0].set(1)
    out_m = user_memory_forward(context, list(user_memory_list), linear_query_weights,
                                mask=mask)
    out_m = jax.block_until_ready(out_m)
    ref_m = user_memory_forward_ref(context, list(user_memory_list), linear_query_weights,
                                    mask=mask)
    assert jnp.allclose(out_m, ref_m, atol=1e-5, rtol=1e-5), "Pallas output mismatch (masked)"

    print("KERNEL_OK")
</pallas_src>

<mosaic_0001>
module attributes {stable_mosaic.version = 11 : i64} {
  func.func @_memnet_fused_kernel(%arg0: memref<2x8x32xf32, #tpu.memory_space<vmem>>, %arg1: memref<2x8x32xf32, #tpu.memory_space<vmem>>, %arg2: memref<2x32x32xf32, #tpu.memory_space<vmem>>, %arg3: memref<2x8x32xf32, #tpu.memory_space<vmem>>) attributes {dimension_semantics = [], scalar_prefetch = 0 : i64, scratch_operands = 0 : i64, tpu.core_type = #tpu.core_type<tc>} {
    %c0 = arith.constant 0 : index
    %c0_0 = arith.constant 0 : index
    %c0_1 = arith.constant 0 : index
    %0 = vector.load %arg1[%c0, %c0_0, %c0_1] : memref<2x8x32xf32, #tpu.memory_space<vmem>>, vector<2x8x32xf32>
    %c0_2 = arith.constant 0 : index
    %c0_3 = arith.constant 0 : index
    %c0_4 = arith.constant 0 : index
    %1 = vector.load %arg0[%c0_2, %c0_3, %c0_4] : memref<2x8x32xf32, #tpu.memory_space<vmem>>, vector<2x8x32xf32>
    %c0_5 = arith.constant 0 : index
    %c0_6 = arith.constant 0 : index
    %c0_7 = arith.constant 0 : index
    %2 = vector.load %arg2[%c0_5, %c0_6, %c0_7] : memref<2x32x32xf32, #tpu.memory_space<vmem>>, vector<1x32x32xf32>
    %3 = vector.shape_cast %2 : vector<1x32x32xf32> to vector<32x32xf32>
    %cst = arith.constant dense<0.000000e+00> : vector<2x8x32xf32>
    %4 = tpu.matmul %1, %3, %cst {dimension_numbers = #tpu.dot_dimension_numbers<[2], [1], [0, 1], [0], [0, 0, 0, 1, 1, 0], [], []>} : vector<2x8x32xf32>, vector<32x32xf32>, vector<2x8x32xf32> -> vector<2x8x32xf32>
    %cst_8 = arith.constant dense<0.000000e+00> : vector<2x8x8xf32>
    %5 = tpu.matmul %4, %0, %cst_8 {dimension_numbers = #tpu.dot_dimension_numbers<[2], [2], [1], [1], [0, 0, 0, 1, 1, 1], [0], [0]>} : vector<2x8x32xf32>, vector<2x8x32xf32>, vector<2x8x8xf32> -> vector<2x8x8xf32>
    %cst_9 = arith.constant dense<0xFF800000> : vector<2x8xf32>
    %6 = vector.multi_reduction <maximumf>, %5, %cst_9 [2] : vector<2x8x8xf32> to vector<2x8xf32>
    %7 = vector.shape_cast %6 : vector<2x8xf32> to vector<2x8x1xf32>
    %8 = vector.broadcast %7 : vector<2x8x1xf32> to vector<2x8x8xf32>
    %9 = arith.subf %5, %8 : vector<2x8x8xf32>
    %10 = math.exp %9 : vector<2x8x8xf32>
    %cst_10 = arith.constant dense<0.000000e+00> : vector<2x8xf32>
    %11 = vector.multi_reduction <add>, %10, %cst_10 [2] : vector<2x8x8xf32> to vector<2x8xf32>
    %12 = vector.shape_cast %11 : vector<2x8xf32> to vector<2x8x1xf32>
    %13 = tpu.reciprocal %12 : vector<2x8x1xf32> -> vector<2x8x1xf32>
    %14 = vector.broadcast %13 : vector<2x8x1xf32> to vector<2x8x8xf32>
    %15 = arith.mulf %10, %14 : vector<2x8x8xf32>
    %cst_11 = arith.constant dense<0.000000e+00> : vector<2x8x32xf32>
    %16 = tpu.matmul %15, %0, %cst_11 {dimension_numbers = #tpu.dot_dimension_numbers<[2], [1], [1], [2], [0, 0, 0, 1, 1, 2], [0], [0]>} : vector<2x8x8xf32>, vector<2x8x32xf32>, vector<2x8x32xf32> -> vector<2x8x32xf32>
    %17 = arith.addf %1, %16 : vector<2x8x32xf32>
    %c1 = arith.constant 1 : index
    %c0_12 = arith.constant 0 : index
    %c0_13 = arith.constant 0 : index
    %18 = vector.load %arg2[%c1, %c0_12, %c0_13] : memref<2x32x32xf32, #tpu.memory_space<vmem>>, vector<1x32x32xf32>
    %19 = vector.shape_cast %18 : vector<1x32x32xf32> to vector<32x32xf32>
    %cst_14 = arith.constant dense<0.000000e+00> : vector<2x8x32xf32>
    %20 = tpu.matmul %17, %19, %cst_14 {dimension_numbers = #tpu.dot_dimension_numbers<[2], [1], [0, 1], [0], [0, 0, 0, 1, 1, 0], [], []>} : vector<2x8x32xf32>, vector<32x32xf32>, vector<2x8x32xf32> -> vector<2x8x32xf32>
    %cst_15 = arith.constant dense<0.000000e+00> : vector<2x8x8xf32>
    %21 = tpu.matmul %20, %0, %cst_15 {dimension_numbers = #tpu.dot_dimension_numbers<[2], [2], [1], [1], [0, 0, 0, 1, 1, 1], [0], [0]>} : vector<2x8x32xf32>, vector<2x8x32xf32>, vector<2x8x8xf32> -> vector<2x8x8xf32>
    %cst_16 = arith.constant dense<0xFF800000> : vector<2x8xf32>
    %22 = vector.multi_reduction <maximumf>, %21, %cst_16 [2] : vector<2x8x8xf32> to vector<2x8xf32>
    %23 = vector.shape_cast %22 : vector<2x8xf32> to vector<2x8x1xf32>
    %24 = vector.broadcast %23 : vector<2x8x1xf32> to vector<2x8x8xf32>
    %25 = arith.subf %21, %24 : vector<2x8x8xf32>
    %26 = math.exp %25 : vector<2x8x8xf32>
    %cst_17 = arith.constant dense<0.000000e+00> : vector<2x8xf32>
    %27 = vector.multi_reduction <add>, %26, %cst_17 [2] : vector<2x8x8xf32> to vector<2x8xf32>
    %28 = vector.shape_cast %27 : vector<2x8xf32> to vector<2x8x1xf32>
    %29 = tpu.reciprocal %28 : vector<2x8x1xf32> -> vector<2x8x1xf32>
    %30 = vector.broadcast %29 : vector<2x8x1xf32> to vector<2x8x8xf32>
    %31 = arith.mulf %26, %30 : vector<2x8x8xf32>
    %cst_18 = arith.constant dense<0.000000e+00> : vector<2x8x32xf32>
    %32 = tpu.matmul %31, %0, %cst_18 {dimension_numbers = #tpu.dot_dimension_numbers<[2], [1], [1], [2], [0, 0, 0, 1, 1, 2], [0], [0]>} : vector<2x8x8xf32>, vector<2x8x32xf32>, vector<2x8x32xf32> -> vector<2x8x32xf32>
    %33 = arith.addf %17, %32 : vector<2x8x32xf32>
    %c0_19 = arith.constant 0 : index
    %c0_20 = arith.constant 0 : index
    %c0_21 = arith.constant 0 : index
    %34 = vector.load %arg3[%c0_19, %c0_20, %c0_21] : memref<2x8x32xf32, #tpu.memory_space<vmem>>, vector<2x8x32xf32>
    tpu.vector_store %arg3[%c0_19, %c0_20, %c0_21], %33 {strides = array<i32>} : memref<2x8x32xf32, #tpu.memory_space<vmem>>, vector<2x8x32xf32>,
    return
  }
}

</mosaic_0001>

<llo_original>
// kernel: tpu_custom_call.1
$region0: #{tpu_custom_call.1}
  #allocation0 [shape = 'u32[]', space=smem, size = 0x4, offset = 0x4, fixed_abs, tag = 'smem constant byte address 0x4 - core index']
  #allocation1 [shape = 'u32[72,128]{1,0:T(1,128)}', space=vmem, size = 0x9000, scoped, tag = 'internal scratch']
  %s0 = inlined_call_operand.hbm [shape: f32[2,8,32], index: 0, kind: input, shape index: {}]
  %s1 = inlined_call_operand.hbm [shape: f32[2,8,32], index: 1, kind: input, shape index: {}]
  %s2 = inlined_call_operand.hbm [shape: f32[2,32,32], index: 2, kind: input, shape index: {}]
  %s3 = inlined_call_operand.hbm [shape: f32[2,8,32], index: 3, kind: output, shape index: {}]
  %s4 = sld [smem:[#allocation0]]
  $region34: #{tpu_custom_call.1} parent=0
    _
  %s6 = ssub.s32 1, %s4
  %s7 = scalar_select 0, %s6, %s4
  $region1: #{tpu_custom_call.1} parent=0
    #allocation2 [shape = 'u8[8192]{0}', space=vmem, size = 0x2000, scoped, tag = 'input window, operand 0, single buffered']
    #allocation3 [shape = 's32[1]{0}', space=sflag, size = 0x4, scoped, tag = 'scoped memory for tpu_custom_call.1']
    #allocation4 [shape = 's32[1]{0}', space=sflag, size = 0x4, scoped, tag = 'scoped memory for tpu_custom_call.1']
    #allocation5 [shape = 'u8[8192]{0}', space=vmem, size = 0x2000, scoped, tag = 'input window, operand 1, single buffered']
    #allocation6 [shape = 's32[1]{0}', space=sflag, size = 0x4, scoped, tag = 'scoped memory for tpu_custom_call.1']
    #allocation7 [shape = 'u8[32768]{0}', space=vmem, size = 0x8000, scoped, tag = 'input window, operand 2, single buffered']
    #allocation8 [shape = 'u8[8192]{0}', space=vmem, size = 0x2000, scoped, tag = 'output window, operand 0, single buffered']
    %8 = vsyncpa [#allocation3], 0
    %9 = vsyncpa [#allocation6], 0
    %10 = vsyncpa [#allocation4], 0
    // Predicated region
    $region2: #{tpu_custom_call.1} parent=1 // pred_check
      _
    $region3: #{tpu_custom_call.1} parent=1 // pred_check_branch
      %12 = sbr.rel (0) target = $region5
    $region4: #{tpu_custom_call.1} parent=1 // pred_region
      %14 = vsyncadd [#allocation3], 0
      %s15 = sshll.u32 %s0, 4
      %s16 = int_to_ptr.hbm [resolvable:$true] %s15
      %s17 = sshll.u32 [#allocation2], 4
      %s18 = int_to_ptr.vmem [resolvable:$true] %s17
      %23 = dma.hbm_to_vmem [thread:$0]  %s16, 256, %s18, [#allocation3], 128, 128, 8
    $region5: #{tpu_custom_call.1} parent=1 // pred_fallthru
      _
    // Predicated region
    $region6: #{tpu_custom_call.1} parent=1 // pred_check
      _
    $region7: #{tpu_custom_call.1} parent=1 // pred_check_branch
      %25 = sbr.rel (0) target = $region9
    $region8: #{tpu_custom_call.1} parent=1 // pred_region
      %27 = vsyncadd [#allocation6], 0
      %s28 = sshll.u32 %s1, 4
      %s29 = int_to_ptr.hbm [resolvable:$true] %s28
      %s30 = sshll.u32 [#allocation5], 4
      %s31 = int_to_ptr.vmem [resolvable:$true] %s30
      %36 = dma.hbm_to_vmem [thread:$0]  %s29, 256, %s31, [#allocation6], 128, 128, 8
    $region9: #{tpu_custom_call.1} parent=1 // pred_fallthru
      _
    // Predicated region
    $region10: #{tpu_custom_call.1} parent=1 // pred_check
      _
    $region11: #{tpu_custom_call.1} parent=1 // pred_check_branch
      %38 = sbr.rel (0) target = $region13
    $region12: #{tpu_custom_call.1} parent=1 // pred_region
      %40 = vsyncadd [#allocation6], 0
      %s41 = sshll.u32 %s2, 4
      %s42 = int_to_ptr.hbm [resolvable:$true] %s41
      %s43 = sshll.u32 [#allocation7], 4
      %s44 = int_to_ptr.vmem [resolvable:$true] %s43
      %49 = dma.hbm_to_vmem [thread:$0]  %s42, 1024, %s44, [#allocation6], 128, 128, 8
    $region13: #{tpu_custom_call.1} parent=1 // pred_fallthru
      _
    // Predicated region
    $region14: #{tpu_custom_call.1} parent=1 // pred_check
      _
    $region15: #{tpu_custom_call.1} parent=1 // pred_check_branch
      %51 = sbr.rel (0) target = $region17
    $region16: #{tpu_custom_call.1} parent=1 // pred_region
      %53 = dma.done [#allocation3], 256
    $region17: #{tpu_custom_call.1} parent=1 // pred_fallthru
      _
    // Predicated region
    $region18: #{tpu_custom_call.1} parent=1 // pred_check
      _
    $region19: #{tpu_custom_call.1} parent=1 // pred_check_branch
      %55 = sbr.rel (0) target = $region21
    $region20: #{tpu_custom_call.1} parent=1 // pred_region
      %57 = dma.done [#allocation6], 256
    $region21: #{tpu_custom_call.1} parent=1 // pred_fallthru
      _
    // Predicated region
    $region22: #{tpu_custom_call.1} parent=1 // pred_check
      _
    $region23: #{tpu_custom_call.1} parent=1 // pred_check_branch
      %59 = sbr.rel (0) target = $region25
    $region24: #{tpu_custom_call.1} parent=1 // pred_region
      %61 = dma.done [#allocation6], 1024
    $region25: #{tpu_custom_call.1} parent=1 // pred_fallthru
      _
    %v62 = vld [vmem:[#allocation5] sm:$0xff]
    %v63 = vld [vmem:[#allocation5 + $0x8] sm:$0xff]
    %v64 = vld [vmem:[#allocation2] sm:$0xff]
    %v65 = vld [vmem:[#allocation2 + $0x8] sm:$0xff]
    %v66 = vld [vmem:[#allocation7] sm:$0xff]
    %v67 = vld [vmem:[#allocation7 + $0x8] sm:$0xff]
    %v68 = vld [vmem:[#allocation7 + $0x10] sm:$0xff]
    %v69 = vld [vmem:[#allocation7 + $0x18] sm:$0xff]
    %vm70 = vcmask 261120
    %v72 = vsel %vm70, %v64, 0
    %v75 = vsel %vm70, %v65, 0
    %v78 = vsel %vm70, %v66, 0
    %v81 = vsel %vm70, %v67, 0
    %v84 = vsel %vm70, %v68, 0
    %v87 = vsel %vm70, %v69, 0
    %89 = vmatpush.xpose.msra.mxu0 0.0
    %90 = vmatpush.xpose.msra.mxu0 0.0
    %91 = vmatpush.xpose.msra.mxu0 0.0
    %92 = vmatpush.xpose.msra.mxu0 0.0
    %93 = vmatpush.xpose.msra.mxu0 0.0
    %94 = vmatpush.xpose.msra.mxu0 0.0
    %95 = vmatpush.xpose.msra.mxu0 0.0
    %96 = vmatpush.xpose.msra.mxu0 0.0
    %97 = vmatpush.xpose.msra.mxu0 0.0
    %98 = vmatpush.xpose.msra.mxu0 0.0
    %99 = vmatpush.xpose.msra.mxu0 0.0
    %100 = vmatpush.xpose.msra.mxu0 0.0
    %101 = vmatpush.xpose.msra.mxu0 %v87
    %102 = vmatpush.xpose.msra.mxu0 %v84
    %103 = vmatpush.xpose.msra.mxu0 %v81
    %104 = vmatpush.xpose.msra.mxu0 %v78
    %105 = vmatmul.f32.gmra.mxu0 %v72
    %v106 = vpop.f32.mrf.mxu0
    %v107 = vadd.f32 0.0, %v106
    %108 = vmatmul.f32.gmra.mxu0 %v75
    %v109 = vpop.f32.mrf.mxu0
    %v110 = vadd.f32 0.0, %v109
    %111 = vdwg.mxu0
    %v113 = vsel %vm70, %v107, 0
    %v116 = vsel %vm70, %v62, 0
    %118 = vmatpush.xpose.msra.mxu0 0.0
    %119 = vmatpush.xpose.msra.mxu0 0.0
    %120 = vmatpush.xpose.msra.mxu0 0.0
    %121 = vmatpush.xpose.msra.mxu0 0.0
    %122 = vmatpush.xpose.msra.mxu0 0.0
    %123 = vmatpush.xpose.msra.mxu0 0.0
    %124 = vmatpush.xpose.msra.mxu0 0.0
    %125 = vmatpush.xpose.msra.mxu0 0.0
    %126 = vmatpush.xpose.msra.mxu0 0.0
    %127 = vmatpush.xpose.msra.mxu0 0.0
    %128 = vmatpush.xpose.msra.mxu0 0.0
    %129 = vmatpush.xpose.msra.mxu0 0.0
    %130 = vmatpush.xpose.msra.mxu0 0.0
    %131 = vmatpush.xpose.msra.mxu0 0.0
    %132 = vmatpush.xpose.msra.mxu0 0.0
    %133 = vmatpush.xpose.msra.mxu0 %v116
    %134 = vmatmul.f32.gmra.mxu0 %v113
    %v135 = vpop.f32.mrf.mxu0
    %v136 = vadd.f32 0.0, %v135
    %137 = vdwg.mxu0
    %v139 = vsel %vm70, %v110, 0
    %v142 = vsel %vm70, %v63, 0
    %144 = vmatpush.xpose.msra.mxu0 0.0
    %145 = vmatpush.xpose.msra.mxu0 0.0
    %146 = vmatpush.xpose.msra.mxu0 0.0
    %147 = vmatpush.xpose.msra.mxu0 0.0
    %148 = vmatpush.xpose.msra.mxu0 0.0
    %149 = vmatpush.xpose.msra.mxu0 0.0
    %150 = vmatpush.xpose.msra.mxu0 0.0
    %151 = vmatpush.xpose.msra.mxu0 0.0
    %152 = vmatpush.xpose.msra.mxu0 0.0
    %153 = vmatpush.xpose.msra.mxu0 0.0
    %154 = vmatpush.xpose.msra.mxu0 0.0
    %155 = vmatpush.xpose.msra.mxu0 0.0
    %156 = vmatpush.xpose.msra.mxu0 0.0
    %157 = vmatpush.xpose.msra.mxu0 0.0
    %158 = vmatpush.xpose.msra.mxu0 0.0
    %159 = vmatpush.xpose.msra.mxu0 %v142
    %160 = vmatmul.f32.gmra.mxu0 %v139
    %v161 = vpop.f32.mrf.mxu0
    %v162 = vadd.f32 0.0, %v161
    %163 = vdwg.mxu0
    %vm164 = vcmask 64512
    %v165 = vsel %vm164, %v136, -inf
    %166 = vmax.xlane.f32.xlu0 %v165
    %v167 = vpop.xlane.xlu0 %166
    %v168 = vsel %vm164, %v162, -inf
    %169 = vmax.xlane.f32.xlu0 %v168
    %v170 = vpop.xlane.xlu0 %169
    %v171 = vsub.f32 %v136, %v167
    %v172 = vsub.f32 %v162, %v170
    %v173 = vmul.f32 %v171, 1.442695
    %v174 = vpow.pop %v173
    %v175 = vmul.f32 %v172, 1.442695
    %v176 = vpow.pop %v175
    %v177 = vsel %vm164, %v174, 0.0
    %178 = vadd.xlane.f32.xlu0 %v177
    %v179 = vpop.xlane.xlu0 %178
    %v180 = vsel %vm164, %v176, 0.0
    %181 = vadd.xlane.f32.xlu0 %v180
    %v182 = vpop.xlane.xlu0 %181
    %v183 = vrcp.pop %v179
    %v184 = vmul.f32 %v179, %v183
    %v185 = vsub.f32 1.0, %v184
    %v186 = vmul.f32 %v183, %v185
    %v187 = vadd.f32 %v183, %v186
    %vm188 = vweird.f32 %v179
    %vm189 = vweird.f32 %v183
    %vm190 = vmor %vm188, %vm189
    %v191 = vsel %vm190, %v183, %v187
    %v192 = vand.u32 2147483647, %v179
    %vm193 = vcmp.eq.f32.partialorder %v192, 8.507059e+37
    %v194 = vand.u32 %v179, 2147483648
    %v195 = vor.u32 1.1754944e-38, %v194
    %v196 = vsel %vm193, %v195, %v191
    %v197 = vrcp.pop %v182
    %v198 = vmul.f32 %v182, %v197
    %v199 = vsub.f32 1.0, %v198
    %v200 = vmul.f32 %v197, %v199
    %v201 = vadd.f32 %v197, %v200
    %vm202 = vweird.f32 %v182
    %vm203 = vweird.f32 %v197
    %vm204 = vmor %vm202, %vm203
    %v205 = vsel %vm204, %v197, %v201
    %v206 = vand.u32 2147483647, %v182
    %vm207 = vcmp.eq.f32.partialorder %v206, 8.507059e+37
    %v208 = vand.u32 %v182, 2147483648
    %v209 = vor.u32 1.1754944e-38, %v208
    %v210 = vsel %vm207, %v209, %v205
    %v211 = vmul.f32 %v174, %v196
    %v212 = vmul.f32 %v176, %v210
    %v214 = vsel %vm164, %v211, 0
    %216 = vmatpush.msra.mxu0 0.0
    %217 = vmatpush.msra.mxu0 0.0
    %218 = vmatpush.msra.mxu0 0.0
    %219 = vmatpush.msra.mxu0 0.0
    %220 = vmatpush.msra.mxu0 0.0
    %221 = vmatpush.msra.mxu0 0.0
    %222 = vmatpush.msra.mxu0 0.0
    %223 = vmatpush.msra.mxu0 0.0
    %224 = vmatpush.msra.mxu0 0.0
    %225 = vmatpush.msra.mxu0 0.0
    %226 = vmatpush.msra.mxu0 0.0
    %227 = vmatpush.msra.mxu0 0.0
    %228 = vmatpush.msra.mxu0 0.0
    %229 = vmatpush.msra.mxu0 0.0
    %230 = vmatpush.msra.mxu0 0.0
    %231 = vmatpush.msra.mxu0 %v62
    %232 = vmatmul.f32.gmra.mxu0 %v214
    %v233 = vpop.f32.mrf.mxu0
    %v234 = vadd.f32 0.0, %v233
    %235 = vdwg.mxu0
    %v237 = vsel %vm164, %v212, 0
    %239 = vmatpush.msra.mxu0 0.0
    %240 = vmatpush.msra.mxu0 0.0
    %241 = vmatpush.msra.mxu0 0.0
    %242 = vmatpush.msra.mxu0 0.0
    %243 = vmatpush.msra.mxu0 0.0
    %244 = vmatpush.msra.mxu0 0.0
    %245 = vmatpush.msra.mxu0 0.0
    %246 = vmatpush.msra.mxu0 0.0
    %247 = vmatpush.msra.mxu0 0.0
    %248 = vmatpush.msra.mxu0 0.0
    %249 = vmatpush.msra.mxu0 0.0
    %250 = vmatpush.msra.mxu0 0.0
    %251 = vmatpush.msra.mxu0 0.0
    %252 = vmatpush.msra.mxu0 0.0
    %253 = vmatpush.msra.mxu0 0.0
    %254 = vmatpush.msra.mxu0 %v63
    %255 = vmatmul.f32.gmra.mxu0 %v237
    %v256 = vpop.f32.mrf.mxu0
    %v257 = vadd.f32 0.0, %v256
    %258 = vdwg.mxu0
    %v259 = vadd.f32 %v64, %v234
    %v260 = vadd.f32 %v65, %v257
    %s261 = scalar_lea.vmem [#allocation7], 32
    %v262 = vld [vmem:[%s261] sm:$0xff]
    %v263 = vld [vmem:[%s261 + $0x8] sm:$0xff]
    %v264 = vld [vmem:[%s261 + $0x10] sm:$0xff]
    %v265 = vld [vmem:[%s261 + $0x18] sm:$0xff]
    %v267 = vsel %vm70, %v259, 0
    %v270 = vsel %vm70, %v260, 0
    %v273 = vsel %vm70, %v262, 0
    %v276 = vsel %vm70, %v263, 0
    %v279 = vsel %vm70, %v264, 0
    %v282 = vsel %vm70, %v265, 0
    %284 = vmatpush.xpose.msra.mxu0 0.0
    %285 = vmatpush.xpose.msra.mxu0 0.0
    %286 = vmatpush.xpose.msra.mxu0 0.0
    %287 = vmatpush.xpose.msra.mxu0 0.0
    %288 = vmatpush.xpose.msra.mxu0 0.0
    %289 = vmatpush.xpose.msra.mxu0 0.0
    %290 = vmatpush.xpose.msra.mxu0 0.0
    %291 = vmatpush.xpose.msra.mxu0 0.0
    %292 = vmatpush.xpose.msra.mxu0 0.0
    %293 = vmatpush.xpose.msra.mxu0 0.0
    %294 = vmatpush.xpose.msra.mxu0 0.0
    %295 = vmatpush.xpose.msra.mxu0 0.0
    %296 = vmatpush.xpose.msra.mxu0 %v282
    %297 = vmatpush.xpose.msra.mxu0 %v279
    %298 = vmatpush.xpose.msra.mxu0 %v276
    %299 = vmatpush.xpose.msra.mxu0 %v273
    %300 = vmatmul.f32.gmra.mxu0 %v267
    %v301 = vpop.f32.mrf.mxu0
    %v302 = vadd.f32 0.0, %v301
    %303 = vmatmul.f32.gmra.mxu0 %v270
    %v304 = vpop.f32.mrf.mxu0
    %v305 = vadd.f32 0.0, %v304
    %306 = vdwg.mxu0
    %v308 = vsel %vm70, %v302, 0
    %310 = vmatpush.xpose.msra.mxu0 0.0
    %311 = vmatpush.xpose.msra.mxu0 0.0
    %312 = vmatpush.xpose.msra.mxu0 0.0
    %313 = vmatpush.xpose.msra.mxu0 0.0
    %314 = vmatpush.xpose.msra.mxu0 0.0
    %315 = vmatpush.xpose.msra.mxu0 0.0
    %316 = vmatpush.xpose.msra.mxu0 0.0
    %317 = vmatpush.xpose.msra.mxu0 0.0
    %318 = vmatpush.xpose.msra.mxu0 0.0
    %319 = vmatpush.xpose.msra.mxu0 0.0
    %320 = vmatpush.xpose.msra.mxu0 0.0
    %321 = vmatpush.xpose.msra.mxu0 0.0
    %322 = vmatpush.xpose.msra.mxu0 0.0
    %323 = vmatpush.xpose.msra.mxu0 0.0
    %324 = vmatpush.xpose.msra.mxu0 0.0
    %325 = vmatpush.xpose.msra.mxu0 %v116
    %326 = vmatmul.f32.gmra.mxu0 %v308
    %v327 = vpop.f32.mrf.mxu0
    %v328 = vadd.f32 0.0, %v327
    %329 = vdwg.mxu0
    %v331 = vsel %vm70, %v305, 0
    %333 = vmatpush.xpose.msra.mxu0 0.0
    %334 = vmatpush.xpose.msra.mxu0 0.0
    %335 = vmatpush.xpose.msra.mxu0 0.0
    %336 = vmatpush.xpose.msra.mxu0 0.0
    %337 = vmatpush.xpose.msra.mxu0 0.0
    %338 = vmatpush.xpose.msra.mxu0 0.0
    %339 = vmatpush.xpose.msra.mxu0 0.0
    %340 = vmatpush.xpose.msra.mxu0 0.0
    %341 = vmatpush.xpose.msra.mxu0 0.0
    %342 = vmatpush.xpose.msra.mxu0 0.0
    %343 = vmatpush.xpose.msra.mxu0 0.0
    %344 = vmatpush.xpose.msra.mxu0 0.0
    %345 = vmatpush.xpose.msra.mxu0 0.0
    %346 = vmatpush.xpose.msra.mxu0 0.0
    %347 = vmatpush.xpose.msra.mxu0 0.0
    %348 = vmatpush.xpose.msra.mxu0 %v142
    %349 = vmatmul.f32.gmra.mxu0 %v331
    %v350 = vpop.f32.mrf.mxu0
    %v351 = vadd.f32 0.0, %v350
    %352 = vdwg.mxu0
    %v353 = vsel %vm164, %v328, -inf
    %354 = vmax.xlane.f32.xlu0 %v353
    %v355 = vpop.xlane.xlu0 %354
    %v356 = vsel %vm164, %v351, -inf
    %357 = vmax.xlane.f32.xlu0 %v356
    %v358 = vpop.xlane.xlu0 %357
    %v359 = vsub.f32 %v328, %v355
    %v360 = vsub.f32 %v351, %v358
    %v361 = vmul.f32 %v359, 1.442695
    %v362 = vpow.pop %v361
    %v363 = vmul.f32 %v360, 1.442695
    %v364 = vpow.pop %v363
    %v365 = vsel %vm164, %v362, 0.0
    %366 = vadd.xlane.f32.xlu0 %v365
    %v367 = vpop.xlane.xlu0 %366
    %v368 = vsel %vm164, %v364, 0.0
    %369 = vadd.xlane.f32.xlu0 %v368
    %v370 = vpop.xlane.xlu0 %369
    %v371 = vrcp.pop %v367
    %v372 = vmul.f32 %v367, %v371
    %v373 = vsub.f32 1.0, %v372
    %v374 = vmul.f32 %v371, %v373
    %v375 = vadd.f32 %v371, %v374
    %vm376 = vweird.f32 %v367
    %vm377 = vweird.f32 %v371
    %vm378 = vmor %vm376, %vm377
    %v379 = vsel %vm378, %v371, %v375
    %v380 = vand.u32 2147483647, %v367
    %vm381 = vcmp.eq.f32.partialorder %v380, 8.507059e+37
    %v382 = vand.u32 %v367, 2147483648
    %v383 = vor.u32 1.1754944e-38, %v382
    %v384 = vsel %vm381, %v383, %v379
    %v385 = vrcp.pop %v370
    %v386 = vmul.f32 %v370, %v385
    %v387 = vsub.f32 1.0, %v386
    %v388 = vmul.f32 %v385, %v387
    %v389 = vadd.f32 %v385, %v388
    %vm390 = vweird.f32 %v370
    %vm391 = vweird.f32 %v385
    %vm392 = vmor %vm390, %vm391
    %v393 = vsel %vm392, %v385, %v389
    %v394 = vand.u32 2147483647, %v370
    %vm395 = vcmp.eq.f32.partialorder %v394, 8.507059e+37
    %v396 = vand.u32 %v370, 2147483648
    %v397 = vor.u32 1.1754944e-38, %v396
    %v398 = vsel %vm395, %v397, %v393
    %v399 = vmul.f32 %v362, %v384
    %v400 = vmul.f32 %v364, %v398
    %v402 = vsel %vm164, %v399, 0
    %404 = vmatpush.msra.mxu0 0.0
    %405 = vmatpush.msra.mxu0 0.0
    %406 = vmatpush.msra.mxu0 0.0
    %407 = vmatpush.msra.mxu0 0.0
    %408 = vmatpush.msra.mxu0 0.0
    %409 = vmatpush.msra.mxu0 0.0
    %410 = vmatpush.msra.mxu0 0.0
    %411 = vmatpush.msra.mxu0 0.0
    %412 = vmatpush.msra.mxu0 0.0
    %413 = vmatpush.msra.mxu0 0.0
    %414 = vmatpush.msra.mxu0 0.0
    %415 = vmatpush.msra.mxu0 0.0
    %416 = vmatpush.msra.mxu0 0.0
    %417 = vmatpush.msra.mxu0 0.0
    %418 = vmatpush.msra.mxu0 0.0
    %419 = vmatpush.msra.mxu0 %v62
    %420 = vmatmul.f32.gmra.mxu0 %v402
    %v421 = vpop.f32.mrf.mxu0
    %v422 = vadd.f32 0.0, %v421
    %423 = vdwg.mxu0
    %v425 = vsel %vm164, %v400, 0
    %427 = vmatpush.msra.mxu0 0.0
    %428 = vmatpush.msra.mxu0 0.0
    %429 = vmatpush.msra.mxu0 0.0
    %430 = vmatpush.msra.mxu0 0.0
    %431 = vmatpush.msra.mxu0 0.0
    %432 = vmatpush.msra.mxu0 0.0
    %433 = vmatpush.msra.mxu0 0.0
    %434 = vmatpush.msra.mxu0 0.0
    %435 = vmatpush.msra.mxu0 0.0
    %436 = vmatpush.msra.mxu0 0.0
    %437 = vmatpush.msra.mxu0 0.0
    %438 = vmatpush.msra.mxu0 0.0
    %439 = vmatpush.msra.mxu0 0.0
    %440 = vmatpush.msra.mxu0 0.0
    %441 = vmatpush.msra.mxu0 0.0
    %442 = vmatpush.msra.mxu0 %v63
    %443 = vmatmul.f32.gmra.mxu0 %v425
    %v444 = vpop.f32.mrf.mxu0
    %v445 = vadd.f32 0.0, %v444
    %446 = vdwg.mxu0
    %v447 = vadd.f32 %v259, %v422
    %v448 = vadd.f32 %v260, %v445
    %449 = vst.msk [vmem:[#allocation8] sm:$0xff] %vm70, %v447
    %450 = vst.msk [vmem:[#allocation8 + $0x8] sm:$0xff] %vm70, %v448
    // Predicated region
    $region26: #{tpu_custom_call.1} parent=1 // pred_check
      _
    $region27: #{tpu_custom_call.1} parent=1 // pred_check_branch
      %452 = sbr.rel (0) target = $region29
    $region28: #{tpu_custom_call.1} parent=1 // pred_region
      %454 = vsyncadd [#allocation4], 0
      %s455 = sshll.u32 [#allocation8], 4
      %s456 = int_to_ptr.vmem [resolvable:$true] %s455
      %s457 = sshll.u32 %s3, 4
      %s458 = int_to_ptr.hbm [resolvable:$true] %s457
      %463 = dma.vmem_to_hbm [thread:$0]  %s456, 256, %s458, [#allocation4], 128, 128, 8
    $region29: #{tpu_custom_call.1} parent=1 // pred_fallthru
      _
    // Predicated region
    $region30: #{tpu_custom_call.1} parent=1 // pred_check
      _
    $region31: #{tpu_custom_call.1} parent=1 // pred_check_branch
      %465 = sbr.rel (0) target = $region33
    $region32: #{tpu_custom_call.1} parent=1 // pred_region
      %467 = dma.done [#allocation4], 256
    $region33: #{tpu_custom_call.1} parent=1 // pred_fallthru
      _
    %468 = vsyncpa [#allocation3], 1
    %469 = vsyncpa [#allocation6], 1
    %470 = vsyncpa [#allocation4], 1

</llo_original>
